<compile_context>
chip_gen: v7x
topology: tpu7x:2x2x1
jax: 0.10.0
libtpu: 0.0.40
codegen_flags: <defaults>
</compile_context>

<pallas_src>
import jax
import jax.numpy as jnp
from jax.experimental import pallas as pl
from jax.experimental.pallas import tpu as pltpu


def _sigmoid(x):
    # 1 / (1 + exp(-x)): exp goes to the EUP, the rest stays on the VPU.
    return 1.0 / (1.0 + jnp.exp(-x))


def _sigmoid_concat_kernel(m1_ref, m2_ref, o_ref):
    # o = sigmoid(concat([m1, m2], axis=1)), fused: the two halves are written
    # directly into the single lane-dense output block (A never hits HBM).
    c1 = m1_ref.shape[1]
    o_ref[:, :c1] = _sigmoid(m1_ref[...])
    o_ref[:, c1:] = _sigmoid(m2_ref[...])


@jax.jit
def mlp_forward(m1, m2):
    """sigmoid(concat([m1, m2], axis=1)) as one gridless Pallas TPU kernel."""
    R, C1 = m1.shape
    R2, C2 = m2.shape
    assert R == R2, (m1.shape, m2.shape)
    C = C1 + C2
    vmem = pl.BlockSpec(memory_space=pltpu.MemorySpace.VMEM)  # whole array in VMEM
    return pl.pallas_call(
        _sigmoid_concat_kernel,
        out_shape=jax.ShapeDtypeStruct((R, C), jnp.float32),
        in_specs=[vmem, vmem],
        out_specs=vmem,
        cost_estimate=pl.CostEstimate(
            flops=2 * R * C,            # add + divide per element
            transcendentals=R * C,      # one exp per element
            bytes_accessed=2 * 4 * R * C,
        ),
    )(m1, m2)


class MLP:
    """JAX/Pallas port of the PyTorch MLP module."""

    def __init__(self, Matrix1, Matrix2, key):
        self.M1 = jnp.asarray(Matrix1, jnp.float32)
        self.M2 = jnp.asarray(Matrix2, jnp.float32)
        assert self.M1.shape[0] == self.M2.shape[0], "concat(dim=1) needs equal rows"
        # Parameter W (shape (A.cols, M1.cols)) exists in the PyTorch module but
        # is never used in forward(); kept only for structural parity.
        a_cols = self.M1.shape[1] + self.M2.shape[1]
        self.W = jax.random.normal(key, (a_cols, self.M1.shape[1]), dtype=jnp.float32)

    def forward(self):
        return mlp_forward(self.M1, self.M2)


if __name__ == "__main__":
    key = jax.random.PRNGKey(0)
    k1, k2, kw = jax.random.split(key, 3)

    # Small, lane-friendly example shapes: M1 (16, 128), M2 (16, 128)
    # -> A and the output are (16, 256) (last dim a multiple of 128).
    M1 = jax.random.normal(k1, (16, 128), dtype=jnp.float32)
    M2 = jax.random.normal(k2, (16, 128), dtype=jnp.float32)

    mlp = MLP(M1, M2, kw)
    out = mlp.forward()
    out = jax.block_until_ready(out)

    # Reference: plain JAX forward of the PyTorch module.
    ref = jax.nn.sigmoid(jnp.concatenate([M1, M2], axis=1))
    assert out.shape == (16, 256)
    assert jnp.allclose(out, ref, atol=1e-5, rtol=1e-5)

    print("KERNEL_OK")
</pallas_src>

<mosaic_0001>
module attributes {stable_mosaic.version = 11 : i64} {
  func.func @_sigmoid_concat_kernel(%arg0: memref<16x128xf32, #tpu.memory_space<vmem>>, %arg1: memref<16x128xf32, #tpu.memory_space<vmem>>, %arg2: memref<16x256xf32, #tpu.memory_space<vmem>>) attributes {dimension_semantics = [], scalar_prefetch = 0 : i64, scratch_operands = 0 : i64, tpu.core_type = #tpu.core_type<tc>} {
    %c0 = arith.constant 0 : index
    %c0_0 = arith.constant 0 : index
    %0 = vector.load %arg0[%c0, %c0_0] : memref<16x128xf32, #tpu.memory_space<vmem>>, vector<16x128xf32>
    %cst = arith.constant 0.000000e+00 : f32
    %1 = vector.broadcast %cst : f32 to vector<16x128xf32>
    %2 = arith.subf %1, %0 : vector<16x128xf32>
    %3 = math.exp %2 : vector<16x128xf32>
    %cst_1 = arith.constant 1.000000e+00 : f32
    %4 = vector.broadcast %cst_1 : f32 to vector<16x128xf32>
    %5 = arith.addf %4, %3 : vector<16x128xf32>
    %cst_2 = arith.constant 1.000000e+00 : f32
    %6 = vector.broadcast %cst_2 : f32 to vector<16x128xf32>
    %7 = arith.divf %6, %5 : vector<16x128xf32>
    %c0_3 = arith.constant 0 : index
    %c0_4 = arith.constant 0 : index
    %8 = vector.load %arg2[%c0_3, %c0_4] : memref<16x256xf32, #tpu.memory_space<vmem>>, vector<16x128xf32>
    tpu.vector_store %arg2[%c0_3, %c0_4], %7 {strides = array<i32>} : memref<16x256xf32, #tpu.memory_space<vmem>>, vector<16x128xf32>,
    %c0_5 = arith.constant 0 : index
    %c0_6 = arith.constant 0 : index
    %9 = vector.load %arg1[%c0_5, %c0_6] : memref<16x128xf32, #tpu.memory_space<vmem>>, vector<16x128xf32>
    %cst_7 = arith.constant 0.000000e+00 : f32
    %10 = vector.broadcast %cst_7 : f32 to vector<16x128xf32>
    %11 = arith.subf %10, %9 : vector<16x128xf32>
    %12 = math.exp %11 : vector<16x128xf32>
    %cst_8 = arith.constant 1.000000e+00 : f32
    %13 = vector.broadcast %cst_8 : f32 to vector<16x128xf32>
    %14 = arith.addf %13, %12 : vector<16x128xf32>
    %cst_9 = arith.constant 1.000000e+00 : f32
    %15 = vector.broadcast %cst_9 : f32 to vector<16x128xf32>
    %16 = arith.divf %15, %14 : vector<16x128xf32>
    %c0_10 = arith.constant 0 : index
    %c128 = arith.constant 128 : index
    %17 = vector.load %arg2[%c0_10, %c128] : memref<16x256xf32, #tpu.memory_space<vmem>>, vector<16x128xf32>
    tpu.vector_store %arg2[%c0_10, %c128], %16 {strides = array<i32>} : memref<16x256xf32, #tpu.memory_space<vmem>>, vector<16x128xf32>,
    return
  }
}

</mosaic_0001>

<llo_original>
// kernel: mlp_forward.1
$region0: #{mlp_forward.1}
  #allocation0 [shape = 'u32[]', space=smem, size = 0x4, offset = 0x4, fixed_abs, tag = 'smem constant byte address 0x4 - core index']
  #allocation1 [shape = 'u32[144,128]{1,0:T(1,128)}', space=vmem, size = 0x12000, scoped, tag = 'internal scratch']
  %s0 = inlined_call_operand.hbm [shape: f32[16,128], index: 0, kind: input, shape index: {}]
  %s1 = inlined_call_operand.hbm [shape: f32[16,128], index: 1, kind: input, shape index: {}]
  %s2 = inlined_call_operand.hbm [shape: f32[16,256], index: 2, kind: output, shape index: {}]
  %s3 = sld [smem:[#allocation0]]
  $region26: #{mlp_forward.1} parent=0
    _
  %s5 = ssub.s32 1, %s3
  %s6 = scalar_select 0, %s5, %s3
  $region1: #{mlp_forward.1} parent=0
    #allocation2 [shape = 'u8[8192]{0}', space=vmem, size = 0x2000, scoped, tag = 'input window, operand 0, single buffered']
    #allocation3 [shape = 's32[1]{0}', space=sflag, size = 0x4, scoped, tag = 'scoped memory for mlp_forward.1']
    #allocation4 [shape = 's32[1]{0}', space=sflag, size = 0x4, scoped, tag = 'scoped memory for mlp_forward.1']
    #allocation5 [shape = 'u8[8192]{0}', space=vmem, size = 0x2000, scoped, tag = 'input window, operand 1, single buffered']
    #allocation6 [shape = 's32[1]{0}', space=sflag, size = 0x4, scoped, tag = 'scoped memory for mlp_forward.1']
    #allocation7 [shape = 'u8[16384]{0}', space=vmem, size = 0x4000, scoped, tag = 'output window, operand 0, single buffered']
    %7 = vsyncpa [#allocation3], 0
    %8 = vsyncpa [#allocation6], 0
    %9 = vsyncpa [#allocation4], 0
    // Predicated region
    $region2: #{mlp_forward.1} parent=1 // pred_check
      _
    $region3: #{mlp_forward.1} parent=1 // pred_check_branch
      %11 = sbr.rel (0) target = $region5
    $region4: #{mlp_forward.1} parent=1 // pred_region
      %s13 = ssub.s32 256, 256
      %14 = vsyncadd [#allocation3], %s13
      %s15 = sshll.u32 [#allocation2], 4
      %s16 = int_to_ptr.vmem [resolvable:$true] %s15
      %21 = dma.hbm_to_vmem [thread:$0]  %s0, 256, %s16, [#allocation3], 128, 128, 8
    $region5: #{mlp_forward.1} parent=1 // pred_fallthru
      _
    // Predicated region
    $region6: #{mlp_forward.1} parent=1 // pred_check
      _
    $region7: #{mlp_forward.1} parent=1 // pred_check_branch
      %23 = sbr.rel (0) target = $region9
    $region8: #{mlp_forward.1} parent=1 // pred_region
      %s25 = ssub.s32 256, 256
      %26 = vsyncadd [#allocation6], %s25
      %s27 = sshll.u32 [#allocation5], 4
      %s28 = int_to_ptr.vmem [resolvable:$true] %s27
      %33 = dma.hbm_to_vmem [thread:$0]  %s1, 256, %s28, [#allocation6], 128, 128, 8
    $region9: #{mlp_forward.1} parent=1 // pred_fallthru
      _
    // Predicated region
    $region10: #{mlp_forward.1} parent=1 // pred_check
      _
    $region11: #{mlp_forward.1} parent=1 // pred_check_branch
      %35 = sbr.rel (0) target = $region13
    $region12: #{mlp_forward.1} parent=1 // pred_region
      %36 = dma.done [#allocation3], 256
    $region13: #{mlp_forward.1} parent=1 // pred_fallthru
      _
    // Predicated region
    $region14: #{mlp_forward.1} parent=1 // pred_check
      _
    $region15: #{mlp_forward.1} parent=1 // pred_check_branch
      %38 = sbr.rel (0) target = $region17
    $region16: #{mlp_forward.1} parent=1 // pred_region
      %39 = dma.done [#allocation6], 256
    $region17: #{mlp_forward.1} parent=1 // pred_fallthru
      _
    %v40 = vld [vmem:[#allocation2] sm:$0xff]
    %v41 = vld [vmem:[#allocation2 + $0x8] sm:$0xff]
    %v42 = vsub.f32 0.0, %v40
    %v43 = vsub.f32 0.0, %v41
    %v44 = vmul.f32 %v42, 1.442695
    %v45 = vpow.pop %v44
    %v46 = vmul.f32 %v43, 1.442695
    %v47 = vpow.pop %v46
    %v48 = vadd.f32 %v45, 1.0
    %v49 = vadd.f32 %v47, 1.0
    %v50 = vrcp.pop %v48
    %v51 = vmul.f32 1.0, %v50
    %v52 = vrcp.pop %v49
    %v53 = vmul.f32 1.0, %v52
    %54 = vst [vmem:[#allocation7] sm:$0xff] %v51
    %55 = vst [vmem:[#allocation7 + $0x10] sm:$0xff] %v53
    %v56 = vld [vmem:[#allocation5] sm:$0xff]
    %v57 = vld [vmem:[#allocation5 + $0x8] sm:$0xff]
    %v58 = vsub.f32 0.0, %v56
    %v59 = vsub.f32 0.0, %v57
    %v60 = vmul.f32 %v58, 1.442695
    %v61 = vpow.pop %v60
    %v62 = vmul.f32 %v59, 1.442695
    %v63 = vpow.pop %v62
    %v64 = vadd.f32 %v61, 1.0
    %v65 = vadd.f32 %v63, 1.0
    %v66 = vrcp.pop %v64
    %v67 = vmul.f32 1.0, %v66
    %v68 = vrcp.pop %v65
    %v69 = vmul.f32 1.0, %v68
    %70 = vst [vmem:[#allocation7 + $0x8] sm:$0xff] %v67
    %71 = vst [vmem:[#allocation7 + $0x18] sm:$0xff] %v69
    // Predicated region
    $region18: #{mlp_forward.1} parent=1 // pred_check
      _
    $region19: #{mlp_forward.1} parent=1 // pred_check_branch
      %73 = sbr.rel (0) target = $region21
    $region20: #{mlp_forward.1} parent=1 // pred_region
      %s75 = ssub.s32 512, 512
      %76 = vsyncadd [#allocation4], %s75
      %s77 = sshll.u32 [#allocation7], 4
      %s78 = int_to_ptr.vmem [resolvable:$true] %s77
      %83 = dma.vmem_to_hbm [thread:$0]  %s78, 512, %s2, [#allocation4], 256, 256, 16
    $region21: #{mlp_forward.1} parent=1 // pred_fallthru
      _
    // Predicated region
    $region22: #{mlp_forward.1} parent=1 // pred_check
      _
    $region23: #{mlp_forward.1} parent=1 // pred_check_branch
      %85 = sbr.rel (0) target = $region25
    $region24: #{mlp_forward.1} parent=1 // pred_region
      %86 = dma.done [#allocation4], 512
    $region25: #{mlp_forward.1} parent=1 // pred_fallthru
      _
    %87 = vsyncpa [#allocation3], 1
    %88 = vsyncpa [#allocation6], 1
    %89 = vsyncpa [#allocation4], 1

</llo_original>
